<compile_context>
chip_gen: v6e
topology: v6e:2x2x1
jax: 0.10.0
libtpu: 0.0.40
codegen_flags: <defaults>
</compile_context>

<pallas_src>
import jax
import jax.numpy as jnp
from jax.experimental import pallas as pl
from jax.experimental.pallas import tpu as pltpu

HIDDEN = 50
PADDED_HIDDEN = 128  # lane-dense hidden width


def mlp_kernel(x_ref, w1_ref, b1_ref, w2_ref, b2_ref, out_ref):
    # fc1: x @ W1 + b1, relu, out: h @ W2 + b2 -- all in one VMEM-resident pass.
    x = x_ref[...]
    h = jnp.dot(x, w1_ref[...], preferred_element_type=jnp.float32) + b1_ref[...]
    h = jnp.maximum(h, 0.0)
    y = jnp.dot(h, w2_ref[...], preferred_element_type=jnp.float32) + b2_ref[...]
    out_ref[...] = y.astype(out_ref.dtype)


def pack_params(w1, b1, w2, b2, *, padded_hidden=PADDED_HIDDEN):
    """One-time conversion from PyTorch nn.Linear layout to kernel layout.

    w1: (50, state_n) -> (state_n, 128)  (transposed + zero-padded columns)
    b1: (50,)         -> (1, 128)        (zero-padded)
    w2: (action_n, 50)-> (128, action_n) (transposed + zero-padded rows)
    b2: (action_n,)   -> (1, action_n)
    Padding is numerically exact: ReLU(0)=0 and the padded W2 rows are zero.
    Do this at init / checkpoint-load time, NOT per forward call.
    """
    hidden = w1.shape[0]
    pad = padded_hidden - hidden
    w1_t = jnp.pad(jnp.transpose(w1), ((0, 0), (0, pad)))
    b1_r = jnp.pad(b1, (0, pad)).reshape(1, -1)
    w2_t = jnp.pad(jnp.transpose(w2), ((0, pad), (0, 0)))
    b2_r = b2.reshape(1, -1)
    return w1_t, b1_r, w2_t, b2_r


def _round_up(x, m):
    return ((x + m - 1) // m) * m


def net_forward(x, params, *, block_m=4096, small_batch_cutoff=64):
    """Pallas equivalent of Net.forward.

    x      : (B, state_n) float32
    params : packed (w1_t (state_n,128), b1_r (1,128), w2_t (128,action_n), b2_r (1,action_n))
    returns (B, action_n) float32
    """
    w1_t, b1_r, w2_t, b2_r = params
    B, state_n = x.shape
    hidden = w1_t.shape[1]
    action_n = w2_t.shape[1]

    # Tiny-batch fast path (e.g. single-state action selection): launch overhead
    # dwarfs the work, and XLA fuses this into the surrounding graph.
    if B <= small_batch_cutoff:
        h = jnp.maximum(x @ w1_t + b1_r, 0.0)
        return (h @ w2_t + b2_r).astype(jnp.float32)

    # Batch tile: as large as block_m allows, but never more than half the batch
    # (rounded to the 8-sublane boundary) so the grid has >= 2 "parallel" steps
    # and both v7x TensorCores get work.  f32 tiles: tm multiple of 8.
    tm = min(block_m, _round_up(pl.cdiv(B, 2), 8))
    if tm >= B:  # don't let the block exceed the batch dim (tiny forced-kernel case)
        tm = B
    grid = (pl.cdiv(B, tm),)

    flops = 2 * B * state_n * hidden + 2 * B * hidden * action_n
    bytes_accessed = 4 * (
        B * state_n + state_n * hidden + hidden + hidden * action_n + action_n
        + B * action_n
    )
    cost = pl.CostEstimate(
        flops=flops, transcendentals=0, bytes_accessed=bytes_accessed
    )

    return pl.pallas_call(
        mlp_kernel,
        out_shape=jax.ShapeDtypeStruct((B, action_n), jnp.float32),
        grid=grid,
        in_specs=[
            pl.BlockSpec((tm, state_n), lambda i: (i, 0)),       # x tile (pipelined)
            pl.BlockSpec((state_n, hidden), lambda i: (0, 0)),   # W1 resident
            pl.BlockSpec((1, hidden), lambda i: (0, 0)),         # b1 resident
            pl.BlockSpec((hidden, action_n), lambda i: (0, 0)),  # W2 resident
            pl.BlockSpec((1, action_n), lambda i: (0, 0)),       # b2 resident
        ],
        out_specs=pl.BlockSpec((tm, action_n), lambda i: (i, 0)),
        compiler_params=pltpu.CompilerParams(
            dimension_semantics=("parallel",),  # megacore sharding on v7x
        ),
        cost_estimate=cost,
    )(x, w1_t, b1_r, w2_t, b2_r)


def init_params(key, action_n, state_n):
    """Matches Net.__init__ (PyTorch layout), then packs once for the kernel."""
    k1, k2, k3, k4 = jax.random.split(key, 4)
    # weights ~ N(0, 0.1); biases keep PyTorch Linear default U(-1/sqrt(fan_in), ...)
    w1 = 0.1 * jax.random.normal(k1, (HIDDEN, state_n), dtype=jnp.float32)
    b1 = jax.random.uniform(
        k2, (HIDDEN,), minval=-1.0 / jnp.sqrt(state_n), maxval=1.0 / jnp.sqrt(state_n)
    ).astype(jnp.float32)
    w2 = 0.1 * jax.random.normal(k3, (action_n, HIDDEN), dtype=jnp.float32)
    b2 = jax.random.uniform(
        k4, (action_n,), minval=-1.0 / jnp.sqrt(float(HIDDEN)),
        maxval=1.0 / jnp.sqrt(float(HIDDEN)),
    ).astype(jnp.float32)
    return (w1, b1, w2, b2), pack_params(w1, b1, w2, b2)


if __name__ == "__main__":
    key = jax.random.PRNGKey(0)
    kx, kp = jax.random.split(key)

    batch, state_n, action_n = 2, 8, 4
    x = jax.random.normal(kx, (batch, state_n), dtype=jnp.float32)
    (w1, b1, w2, b2), packed = init_params(kp, action_n, state_n)

    # Pure-JAX reference (PyTorch-layout weights, unpadded).
    ref_fn = lambda xx: jnp.maximum(xx @ w1.T + b1, 0.0) @ w2.T + b2

    # 1) Tiny batch: fast path (no pallas_call).
    out_small = net_forward(x, packed)
    jax.block_until_ready(out_small)
    assert out_small.shape == (batch, action_n)
    assert jnp.allclose(out_small, ref_fn(x), atol=1e-5), "mismatch (fast path)"

    # 2) Same tiny batch, forced through the Pallas kernel (coverage of edge case).
    out_small_k = net_forward(x, packed, small_batch_cutoff=0)
    jax.block_until_ready(out_small_k)
    assert jnp.allclose(out_small_k, ref_fn(x), atol=1e-5), "mismatch (forced kernel)"

    # 3) Replay-buffer-sized batch: tiled kernel path (grid of 2 parallel steps).
    big_b = 1024
    xb = jax.random.normal(jax.random.PRNGKey(1), (big_b, state_n), dtype=jnp.float32)
    out_big = net_forward(xb, packed)
    jax.block_until_ready(out_big)
    assert out_big.shape == (big_b, action_n)
    assert jnp.allclose(out_big, ref_fn(xb), atol=1e-5), "mismatch (big batch)"

    print("KERNEL_OK")
</pallas_src>

<mosaic_0001>
module attributes {stable_mosaic.version = 11 : i64} {
  func.func @mlp_kernel(%arg0: i32, %arg1: memref<2x8xf32, #tpu.memory_space<vmem>>, %arg2: memref<8x128xf32, #tpu.memory_space<vmem>>, %arg3: memref<1x128xf32, #tpu.memory_space<vmem>>, %arg4: memref<128x4xf32, #tpu.memory_space<vmem>>, %arg5: memref<1x4xf32, #tpu.memory_space<vmem>>, %arg6: memref<2x4xf32, #tpu.memory_space<vmem>>) attributes {dimension_semantics = [#tpu.dimension_semantics<parallel>], iteration_bounds = array<i64: 1>, scalar_prefetch = 0 : i64, scratch_operands = 0 : i64, tpu.core_type = #tpu.core_type<tc>, window_params = [{transform_indices = @transform_0, window_bounds = array<i64: 2, 8>}, {pipeline_mode = #tpu.pipeline_mode<synchronous>, transform_indices = @transform_1, window_bounds = array<i64: 8, 128>}, {pipeline_mode = #tpu.pipeline_mode<synchronous>, transform_indices = @transform_2, window_bounds = array<i64: 1, 128>}, {pipeline_mode = #tpu.pipeline_mode<synchronous>, transform_indices = @transform_3, window_bounds = array<i64: 128, 4>}, {pipeline_mode = #tpu.pipeline_mode<synchronous>, transform_indices = @transform_4, window_bounds = array<i64: 1, 4>}, {transform_indices = @transform_5, window_bounds = array<i64: 2, 4>}]} {
    %c0 = arith.constant 0 : index
    %c0_0 = arith.constant 0 : index
    %0 = vector.load %arg1[%c0, %c0_0] : memref<2x8xf32, #tpu.memory_space<vmem>>, vector<2x8xf32>
    %c0_1 = arith.constant 0 : index
    %c0_2 = arith.constant 0 : index
    %1 = vector.load %arg2[%c0_1, %c0_2] : memref<8x128xf32, #tpu.memory_space<vmem>>, vector<8x128xf32>
    %cst = arith.constant dense<0.000000e+00> : vector<2x128xf32>
    %2 = tpu.matmul %0, %1, %cst {dimension_numbers = #tpu.dot_dimension_numbers<[1], [0], [0], [1], [0, 0, 1, 1], [], []>} : vector<2x8xf32>, vector<8x128xf32>, vector<2x128xf32> -> vector<2x128xf32>
    %c0_3 = arith.constant 0 : index
    %c0_4 = arith.constant 0 : index
    %3 = vector.load %arg3[%c0_3, %c0_4] : memref<1x128xf32, #tpu.memory_space<vmem>>, vector<1x128xf32>
    %4 = vector.broadcast %3 : vector<1x128xf32> to vector<2x128xf32>
    %5 = arith.addf %2, %4 : vector<2x128xf32>
    %cst_5 = arith.constant 0.000000e+00 : f32
    %6 = vector.broadcast %cst_5 : f32 to vector<2x128xf32>
    %7 = arith.maximumf %5, %6 : vector<2x128xf32>
    %c0_6 = arith.constant 0 : index
    %c0_7 = arith.constant 0 : index
    %8 = vector.load %arg4[%c0_6, %c0_7] : memref<128x4xf32, #tpu.memory_space<vmem>>, vector<128x4xf32>
    %cst_8 = arith.constant dense<0.000000e+00> : vector<2x4xf32>
    %9 = tpu.matmul %7, %8, %cst_8 {dimension_numbers = #tpu.dot_dimension_numbers<[1], [0], [0], [1], [0, 0, 1, 1], [], []>} : vector<2x128xf32>, vector<128x4xf32>, vector<2x4xf32> -> vector<2x4xf32>
    %c0_9 = arith.constant 0 : index
    %c0_10 = arith.constant 0 : index
    %10 = vector.load %arg5[%c0_9, %c0_10] : memref<1x4xf32, #tpu.memory_space<vmem>>, vector<1x4xf32>
    %11 = vector.broadcast %10 : vector<1x4xf32> to vector<2x4xf32>
    %12 = arith.addf %9, %11 : vector<2x4xf32>
    %c0_11 = arith.constant 0 : index
    %c0_12 = arith.constant 0 : index
    %13 = vector.load %arg6[%c0_11, %c0_12] : memref<2x4xf32, #tpu.memory_space<vmem>>, vector<2x4xf32>
    tpu.vector_store %arg6[%c0_11, %c0_12], %12 {strides = array<i32>} : memref<2x4xf32, #tpu.memory_space<vmem>>, vector<2x4xf32>,
    return
  }
  func.func @transform_0(%arg0: i32) -> (i32, i32) {
    %c0_i32 = arith.constant 0 : i32
    %c0_i32_0 = arith.constant 0 : i32
    return %arg0, %c0_i32 : i32, i32
  }
  func.func @transform_1(%arg0: i32) -> (i32, i32) {
    %c0_i32 = arith.constant 0 : i32
    %c0_i32_0 = arith.constant 0 : i32
    %c0_i32_1 = arith.constant 0 : i32
    return %c0_i32, %c0_i32_0 : i32, i32
  }
  func.func @transform_2(%arg0: i32) -> (i32, i32) {
    %c0_i32 = arith.constant 0 : i32
    %c0_i32_0 = arith.constant 0 : i32
    %c0_i32_1 = arith.constant 0 : i32
    return %c0_i32, %c0_i32_0 : i32, i32
  }
  func.func @transform_3(%arg0: i32) -> (i32, i32) {
    %c0_i32 = arith.constant 0 : i32
    %c0_i32_0 = arith.constant 0 : i32
    %c0_i32_1 = arith.constant 0 : i32
    return %c0_i32, %c0_i32_0 : i32, i32
  }
  func.func @transform_4(%arg0: i32) -> (i32, i32) {
    %c0_i32 = arith.constant 0 : i32
    %c0_i32_0 = arith.constant 0 : i32
    %c0_i32_1 = arith.constant 0 : i32
    return %c0_i32, %c0_i32_0 : i32, i32
  }
  func.func @transform_5(%arg0: i32) -> (i32, i32) {
    %c0_i32 = arith.constant 0 : i32
    %c0_i32_0 = arith.constant 0 : i32
    return %arg0, %c0_i32 : i32, i32
  }
}

</mosaic_0001>

<llo_original>
// kernel: tpu_custom_call.1
$region0: #{tpu_custom_call.1}
  #allocation0 [shape = 'u32[]', space=smem, size = 0x4, offset = 0x4, fixed_abs, tag = 'smem constant byte address 0x4 - core index']
  #allocation1 [shape = 'u32[144,128]{1,0:T(1,128)}', space=vmem, size = 0x12000, scoped, tag = 'internal scratch']
  %s0 = inlined_call_operand.vmem [shape: f32[2,8], index: 0, kind: input, shape index: {}]
  %s1 = inlined_call_operand.vmem [shape: f32[8,128], index: 1, kind: input, shape index: {}]
  %s2 = inlined_call_operand.vmem [shape: f32[1,128], index: 2, kind: input, shape index: {}]
  %s3 = inlined_call_operand.vmem [shape: f32[128,4], index: 3, kind: input, shape index: {}]
  %s4 = inlined_call_operand.vmem [shape: f32[1,4], index: 4, kind: input, shape index: {}]
  %s5 = inlined_call_operand.hbm [shape: f32[2,4], index: 5, kind: output, shape index: {}]
  %s6 = sld [smem:[#allocation0]]
  $region30: #{tpu_custom_call.1} parent=0
    _
  %s8 = ssub.s32 1, %s6
  %s9 = scalar_select 0, %s8, %s6
  $region1: #{tpu_custom_call.1} parent=0
    #allocation2 [shape = 'u8[1024]{0}', space=vmem, size = 0x400, scoped, tag = 'output window, operand 0, single buffered']
    #allocation3 [shape = 's32[1]{0}', space=sflag, size = 0x4, scoped, tag = 'scoped memory for tpu_custom_call.1']
    %10 = vsyncpa [#allocation3], 0
    // Predicated region
    $region2: #{tpu_custom_call.1} parent=1 // pred_check
      _
    $region3: #{tpu_custom_call.1} parent=1 // pred_check_branch
      %12 = sbr.rel (0) target = $region5
    $region4: #{tpu_custom_call.1} parent=1 // pred_region
      _
    $region5: #{tpu_custom_call.1} parent=1 // pred_fallthru
      _
    // Predicated region
    $region6: #{tpu_custom_call.1} parent=1 // pred_check
      _
    $region7: #{tpu_custom_call.1} parent=1 // pred_check_branch
      %14 = sbr.rel (0) target = $region9
    $region8: #{tpu_custom_call.1} parent=1 // pred_region
      _
    $region9: #{tpu_custom_call.1} parent=1 // pred_fallthru
      _
    // Predicated region
    $region10: #{tpu_custom_call.1} parent=1 // pred_check
      _
    $region11: #{tpu_custom_call.1} parent=1 // pred_check_branch
      %16 = sbr.rel (0) target = $region13
    $region12: #{tpu_custom_call.1} parent=1 // pred_region
      _
    $region13: #{tpu_custom_call.1} parent=1 // pred_fallthru
      _
    // Predicated region
    $region14: #{tpu_custom_call.1} parent=1 // pred_check
      _
    $region15: #{tpu_custom_call.1} parent=1 // pred_check_branch
      %18 = sbr.rel (0) target = $region17
    $region16: #{tpu_custom_call.1} parent=1 // pred_region
      _
    $region17: #{tpu_custom_call.1} parent=1 // pred_fallthru
      _
    // Predicated region
    $region18: #{tpu_custom_call.1} parent=1 // pred_check
      _
    $region19: #{tpu_custom_call.1} parent=1 // pred_check_branch
      %20 = sbr.rel (0) target = $region21
    $region20: #{tpu_custom_call.1} parent=1 // pred_region
      _
    $region21: #{tpu_custom_call.1} parent=1 // pred_fallthru
      _
    %v21 = vld [vmem:[%s0] sm:$0x3]
    %v22 = vld [vmem:[%s1] sm:$0xff]
    %v23 = vld [vmem:[%s2] sm:$0x1]
    %v25 = vlaneseq
    %v26 = vshrl.u32 %v25, 7
    %v27 = vsub.s32 0, %v26
    %v28 = vrot.slane %v23, %v27
    %vm30 = vcmask 64512
    %v32 = vsel %vm30, %v21, 0
    %34 = vmatprep.subr.mxu0 0.0
    %35 = vmatpush1.msra.mxu0 0.0
    %36 = vmatprep.subr.mxu0 0.0
    %37 = vmatpush1.msra.mxu0 0.0
    %38 = vmatprep.subr.mxu0 0.0
    %39 = vmatpush1.msra.mxu0 0.0
    %40 = vmatprep.subr.mxu0 0.0
    %41 = vmatpush1.msra.mxu0 0.0
    %42 = vmatprep.subr.mxu0 0.0
    %43 = vmatpush1.msra.mxu0 0.0
    %44 = vmatprep.subr.mxu0 0.0
    %45 = vmatpush1.msra.mxu0 0.0
    %46 = vmatprep.subr.mxu0 0.0
    %47 = vmatpush1.msra.mxu0 0.0
    %48 = vmatprep.subr.mxu0 0.0
    %49 = vmatpush1.msra.mxu0 0.0
    %50 = vmatprep.subr.mxu0 0.0
    %51 = vmatpush1.msra.mxu0 0.0
    %52 = vmatprep.subr.mxu0 0.0
    %53 = vmatpush1.msra.mxu0 0.0
    %54 = vmatprep.subr.mxu0 0.0
    %55 = vmatpush1.msra.mxu0 0.0
    %56 = vmatprep.subr.mxu0 0.0
    %57 = vmatpush1.msra.mxu0 0.0
    %58 = vmatprep.subr.mxu0 0.0
    %59 = vmatpush1.msra.mxu0 0.0
    %60 = vmatprep.subr.mxu0 0.0
    %61 = vmatpush1.msra.mxu0 0.0
    %62 = vmatprep.subr.mxu0 0.0
    %63 = vmatpush1.msra.mxu0 0.0
    %64 = vmatprep.subr.mxu0 0.0
    %65 = vmatpush1.msra.mxu0 %v22
    %66 = vmatprep.subr.mxu0 0.0
    %67 = vmatpush2.msra.mxu0 0.0
    %68 = vmatprep.subr.mxu0 0.0
    %69 = vmatpush2.msra.mxu0 0.0
    %70 = vmatprep.subr.mxu0 0.0
    %71 = vmatpush2.msra.mxu0 0.0
    %72 = vmatprep.subr.mxu0 0.0
    %73 = vmatpush2.msra.mxu0 0.0
    %74 = vmatprep.subr.mxu0 0.0
    %75 = vmatpush2.msra.mxu0 0.0
    %76 = vmatprep.subr.mxu0 0.0
    %77 = vmatpush2.msra.mxu0 0.0
    %78 = vmatprep.subr.mxu0 0.0
    %79 = vmatpush2.msra.mxu0 0.0
    %80 = vmatprep.subr.mxu0 0.0
    %81 = vmatpush2.msra.mxu0 0.0
    %82 = vmatprep.subr.mxu0 0.0
    %83 = vmatpush2.msra.mxu0 0.0
    %84 = vmatprep.subr.mxu0 0.0
    %85 = vmatpush2.msra.mxu0 0.0
    %86 = vmatprep.subr.mxu0 0.0
    %87 = vmatpush2.msra.mxu0 0.0
    %88 = vmatprep.subr.mxu0 0.0
    %89 = vmatpush2.msra.mxu0 0.0
    %90 = vmatprep.subr.mxu0 0.0
    %91 = vmatpush2.msra.mxu0 0.0
    %92 = vmatprep.subr.mxu0 0.0
    %93 = vmatpush2.msra.mxu0 0.0
    %94 = vmatprep.subr.mxu0 0.0
    %95 = vmatpush2.msra.mxu0 0.0
    %96 = vmatprep.subr.mxu0 0.0
    %97 = vmatpush2.msra.mxu0 0.0
    %98 = vmatprep.mubr.f32.mxu0 0.0
    %99 = vmatmul.mubr.f32.gmra.mxu0 %v32
    %v100 = vpop.f32.mrf.mxu0
    %v101 = vadd.f32 %v28, %v100
    %v102 = vpop.f32.mrf.mxu0
    %103 = vdwg.mxu0
    %v104 = vmax.f32 %v101, 0.0
    %v105 = vld [vmem:[%s3] sm:$0xff]
    %v106 = vld [vmem:[%s3 + $0x8] sm:$0xff]
    %v107 = vld [vmem:[%s3 + $0x10] sm:$0xff]
    %v108 = vld [vmem:[%s3 + $0x18] sm:$0xff]
    %v109 = vld [vmem:[%s3 + $0x20] sm:$0xff]
    %v110 = vld [vmem:[%s3 + $0x28] sm:$0xff]
    %v111 = vld [vmem:[%s3 + $0x30] sm:$0xff]
    %v112 = vld [vmem:[%s3 + $0x38] sm:$0xff]
    %v113 = vld [vmem:[%s3 + $0x40] sm:$0xff]
    %v114 = vld [vmem:[%s3 + $0x48] sm:$0xff]
    %v115 = vld [vmem:[%s3 + $0x50] sm:$0xff]
    %v116 = vld [vmem:[%s3 + $0x58] sm:$0xff]
    %v117 = vld [vmem:[%s3 + $0x60] sm:$0xff]
    %v118 = vld [vmem:[%s3 + $0x68] sm:$0xff]
    %v119 = vld [vmem:[%s3 + $0x70] sm:$0xff]
    %v120 = vld [vmem:[%s3 + $0x78] sm:$0xff]
    %v121 = vld [vmem:[%s4] sm:$0x1]
    %v123 = vlaneseq
    %v124 = vshrl.u32 %v123, 7
    %v125 = vsub.s32 0, %v124
    %v126 = vrot.slane %v121, %v125
    %128 = vmatprep.subr.mxu0 0.0
    %129 = vmatpush1.msra.mxu0 %v120
    %130 = vmatprep.subr.mxu0 0.0
    %131 = vmatpush1.msra.mxu0 %v119
    %132 = vmatprep.subr.mxu0 0.0
    %133 = vmatpush1.msra.mxu0 %v118
    %134 = vmatprep.subr.mxu0 0.0
    %135 = vmatpush1.msra.mxu0 %v117
    %136 = vmatprep.subr.mxu0 0.0
    %137 = vmatpush1.msra.mxu0 %v116
    %138 = vmatprep.subr.mxu0 0.0
    %139 = vmatpush1.msra.mxu0 %v115
    %140 = vmatprep.subr.mxu0 0.0
    %141 = vmatpush1.msra.mxu0 %v114
    %142 = vmatprep.subr.mxu0 0.0
    %143 = vmatpush1.msra.mxu0 %v113
    %144 = vmatprep.subr.mxu0 0.0
    %145 = vmatpush1.msra.mxu0 %v112
    %146 = vmatprep.subr.mxu0 0.0
    %147 = vmatpush1.msra.mxu0 %v111
    %148 = vmatprep.subr.mxu0 0.0
    %149 = vmatpush1.msra.mxu0 %v110
    %150 = vmatprep.subr.mxu0 0.0
    %151 = vmatpush1.msra.mxu0 %v109
    %152 = vmatprep.subr.mxu0 0.0
    %153 = vmatpush1.msra.mxu0 %v108
    %154 = vmatprep.subr.mxu0 0.0
    %155 = vmatpush1.msra.mxu0 %v107
    %156 = vmatprep.subr.mxu0 0.0
    %157 = vmatpush1.msra.mxu0 %v106
    %158 = vmatprep.subr.mxu0 0.0
    %159 = vmatpush1.msra.mxu0 %v105
    %160 = vmatprep.subr.mxu0 0.0
    %161 = vmatpush2.msra.mxu0 0.0
    %162 = vmatprep.subr.mxu0 0.0
    %163 = vmatpush2.msra.mxu0 0.0
    %164 = vmatprep.subr.mxu0 0.0
    %165 = vmatpush2.msra.mxu0 0.0
    %166 = vmatprep.subr.mxu0 0.0
    %167 = vmatpush2.msra.mxu0 0.0
    %168 = vmatprep.subr.mxu0 0.0
    %169 = vmatpush2.msra.mxu0 0.0
    %170 = vmatprep.subr.mxu0 0.0
    %171 = vmatpush2.msra.mxu0 0.0
    %172 = vmatprep.subr.mxu0 0.0
    %173 = vmatpush2.msra.mxu0 0.0
    %174 = vmatprep.subr.mxu0 0.0
    %175 = vmatpush2.msra.mxu0 0.0
    %176 = vmatprep.subr.mxu0 0.0
    %177 = vmatpush2.msra.mxu0 0.0
    %178 = vmatprep.subr.mxu0 0.0
    %179 = vmatpush2.msra.mxu0 0.0
    %180 = vmatprep.subr.mxu0 0.0
    %181 = vmatpush2.msra.mxu0 0.0
    %182 = vmatprep.subr.mxu0 0.0
    %183 = vmatpush2.msra.mxu0 0.0
    %184 = vmatprep.subr.mxu0 0.0
    %185 = vmatpush2.msra.mxu0 0.0
    %186 = vmatprep.subr.mxu0 0.0
    %187 = vmatpush2.msra.mxu0 0.0
    %188 = vmatprep.subr.mxu0 0.0
    %189 = vmatpush2.msra.mxu0 0.0
    %190 = vmatprep.subr.mxu0 0.0
    %191 = vmatpush2.msra.mxu0 0.0
    %192 = vmatprep.mubr.f32.mxu0 0.0
    %193 = vmatmul.mubr.f32.gmra.mxu0 %v104
    %v194 = vpop.f32.mrf.mxu0
    %v195 = vadd.f32 %v126, %v194
    %v196 = vpop.f32.mrf.mxu0
    %197 = vdwg.mxu0
    %vm198 = vcmask 25600
    %199 = vst.msk [vmem:[#allocation2] sm:$0x3] %vm198, %v195
    // Predicated region
    $region22: #{tpu_custom_call.1} parent=1 // pred_check
      _
    $region23: #{tpu_custom_call.1} parent=1 // pred_check_branch
      %201 = sbr.rel (0) target = $region25
    $region24: #{tpu_custom_call.1} parent=1 // pred_region
      %s203 = ssub.s32 32, 32
      %204 = vsyncadd [#allocation3], %s203
      %s206 = sshll.u32 [#allocation2], 4
      %s207 = int_to_ptr.vmem [resolvable:$true] %s206
      %209 = dma.vmem_to_hbm [thread:$0]  %s207, 32, %s5, [#allocation3]
    $region25: #{tpu_custom_call.1} parent=1 // pred_fallthru
      _
    // Predicated region
    $region26: #{tpu_custom_call.1} parent=1 // pred_check
      _
    $region27: #{tpu_custom_call.1} parent=1 // pred_check_branch
      %211 = sbr.rel (0) target = $region29
    $region28: #{tpu_custom_call.1} parent=1 // pred_region
      %212 = dma.done [#allocation3], 32
    $region29: #{tpu_custom_call.1} parent=1 // pred_fallthru
      _
    %213 = vsyncpa [#allocation3], 1

</llo_original>
